<compile_context>
chip_gen: v6e
topology: v6e:2x2x1
jax: 0.10.0
libtpu: 0.0.40
codegen_flags: <defaults>
</compile_context>

<pallas_src>
import jax
import jax.numpy as jnp
from jax.experimental import pallas as pl
from jax.experimental.pallas import tpu as pltpu


def _round_up(a, b):
    return -(-a // b) * b


def _vmem_budget():
    """Generation-aware (tile_budget_bytes, vmem_limit_bytes)."""
    vmem_cap = 64 * 1024 * 1024  # conservative fallback (v7x per-TC size)
    try:
        info = pltpu.get_tpu_info()
        vmem_cap = int(getattr(info, "vmem_capacity_bytes", vmem_cap))
    except Exception:
        pass

    if vmem_cap >= 96 * 1024 * 1024:
        # v5e / v6e: 128 MiB physical VMEM -> large tiles amortize per-step cost.
        budget = 44 * 1024 * 1024
        limit = 96 * 1024 * 1024
    else:
        # v7x: 64 MiB physical -> push past the default scoped limit but keep
        # headroom for double-buffered inputs + f32 temporaries.
        budget = 24 * 1024 * 1024
        limit = 48 * 1024 * 1024
    limit = min(limit, (vmem_cap * 3) // 4)
    return budget, limit


def _choose_tiles(R, L, itemsize, budget_bytes):
    """Pick (row tile TR, lane tile TL) for an (R, L) slab.

    Per-step VMEM ~= 2 * TR*TL*itemsize   (double-buffered input tile)
                   + 2 * TR*TL*4          (f32 upcast + squared temporaries)
    """
    per_elem = 2 * itemsize + 8
    max_tile_elems = max(8 * 128, budget_bytes // per_elem)

    # Reduction (lane) axis: whole axis in one block if a tile with at least
    # 8 rows still fits; otherwise chunk in multiples of 128 lanes and
    # accumulate across the innermost ("arbitrary") grid axis.
    if L <= max_tile_elems // 8:
        TL = L  # full-extent block: allowed for any L
    else:
        TL = max(128, (max_tile_elems // 8) // 128 * 128)

    # Row axis: as many rows as the budget allows, multiple of 8 (sublane).
    if R <= 8:
        TR = R  # full-extent block for tiny R
    else:
        TR = max(8, (max_tile_elems // TL) // 8 * 8)
        # Guarantee >= 2 row blocks so the "parallel" axis can shard across
        # v7x's two TensorCores (negligible cost on 1-TC v5e/v6e). Also keeps
        # TR <= R, so the only partial row block is the trailing one.
        half_rows = _round_up((R + 1) // 2, 8)
        TR = min(TR, half_rows)
    return TR, TL


def _make_direct_kernel(eps):
    """Single reduction block along L: no accumulator, no branches."""

    def kernel(x_ref, o_ref):
        x = x_ref[...].astype(jnp.float32)  # f32 accumulate (no bf16 VPU on v5e)
        s = jnp.sum(x * x, axis=-1, keepdims=True)
        o_ref[...] = jnp.sqrt(s + eps).astype(o_ref.dtype)

    return kernel


def _make_accum_kernel(L, TL, eps):
    """Chunked reduction along L with an f32 (TR, 1) scratch accumulator."""
    needs_mask = (L % TL) != 0

    def kernel(x_ref, o_ref, acc_ref):
        k = pl.program_id(1)
        nk = pl.num_programs(1)

        @pl.when(k == 0)
        def _():
            acc_ref[...] = jnp.zeros_like(acc_ref)

        def accumulate(mask_oob):
            x = x_ref[...].astype(jnp.float32)
            if mask_oob:
                # Cheap (1, TL) iota; broadcast inside jnp.where.
                lane = jax.lax.broadcasted_iota(jnp.int32, (1, TL), 1)
                x = jnp.where(k * TL + lane < L, x, 0.0)
            acc_ref[...] += jnp.sum(x * x, axis=-1, keepdims=True)

        if needs_mask:
            # Only the last reduction block has out-of-bounds lanes; every other
            # step takes the unmasked fast path.
            @pl.when(k < nk - 1)
            def _():
                accumulate(False)

            @pl.when(k == nk - 1)
            def _():
                accumulate(True)
        else:
            accumulate(False)

        @pl.when(k == nk - 1)
        def _():
            # eps + sqrt applied exactly once, in the epilogue.
            o_ref[...] = jnp.sqrt(acc_ref[...] + eps).astype(o_ref.dtype)

    return kernel


def l2_pooling(x, eps=1e-8, _force_tiles=None):
    """x: (N, C, H, W) -> (N, C), matching torch L2Pooling.forward."""
    N, C, H, W = x.shape
    R, L = N * C, H * W
    x2d = x.reshape(R, L)

    # TODO(synk): for very small H*W (< 128 lanes) fold several rows into the
    # lane axis in the wrapper (segmented reduce) to avoid lane-padded vregs
    # and tiny strided DMA rows.

    itemsize = jnp.dtype(x.dtype).itemsize
    budget, vmem_limit = _vmem_budget()
    if _force_tiles is None:
        TR, TL = _choose_tiles(R, L, itemsize, budget)
    else:
        TR, TL = _force_tiles  # test hook

    nr = pl.cdiv(R, TR)
    nk = pl.cdiv(L, TL)

    cost = pl.CostEstimate(
        flops=2 * R * L,
        transcendentals=R,
        bytes_accessed=R * L * itemsize + R * itemsize,
    )

    if nk == 1:
        out2d = pl.pallas_call(
            _make_direct_kernel(eps),
            out_shape=jax.ShapeDtypeStruct((R, 1), x.dtype),
            grid_spec=pltpu.PrefetchScalarGridSpec(
                num_scalar_prefetch=0,
                grid=(nr,),
                in_specs=[pl.BlockSpec((TR, TL), lambda i: (i, 0))],
                out_specs=pl.BlockSpec((TR, 1), lambda i: (i, 0)),
            ),
            compiler_params=pltpu.CompilerParams(
                dimension_semantics=("parallel",),
                vmem_limit_bytes=vmem_limit,
            ),
            cost_estimate=cost,
        )(x2d)
    else:
        out2d = pl.pallas_call(
            _make_accum_kernel(L, TL, eps),
            out_shape=jax.ShapeDtypeStruct((R, 1), x.dtype),
            grid_spec=pltpu.PrefetchScalarGridSpec(
                num_scalar_prefetch=0,
                grid=(nr, nk),  # reduction axis innermost
                in_specs=[pl.BlockSpec((TR, TL), lambda i, k: (i, k))],
                out_specs=pl.BlockSpec((TR, 1), lambda i, k: (i, 0)),
                scratch_shapes=[pltpu.VMEM((TR, 1), jnp.float32)],
            ),
            compiler_params=pltpu.CompilerParams(
                dimension_semantics=("parallel", "arbitrary"),
                vmem_limit_bytes=vmem_limit,
            ),
            cost_estimate=cost,
        )(x2d)

    return out2d.reshape(N, C)


def _ref(x, eps=1e-8):
    return jnp.sqrt(jnp.sum(x.astype(jnp.float32) ** 2, axis=(-1, -2)) + eps).astype(
        x.dtype
    )


if __name__ == "__main__":
    key = jax.random.PRNGKey(0)

    # Main case: (N, C, H, W) = (2, 4, 16, 16) -> single-block (direct) path.
    x = jax.random.normal(key, (2, 4, 16, 16), dtype=jnp.float32)
    y = l2_pooling(x)
    jax.block_until_ready(y)
    assert y.shape == (2, 4)
    assert jnp.allclose(y, _ref(x), atol=1e-5, rtol=1e-5)

    # Exercise the chunked-reduction path (even split, no lane mask).
    y2 = l2_pooling(x, _force_tiles=(8, 128))  # L=256 -> 2 reduction blocks
    jax.block_until_ready(y2)
    assert jnp.allclose(y2, _ref(x), atol=1e-5, rtol=1e-5)

    # Exercise the chunked-reduction path with a partial last block (lane mask).
    x3 = jax.random.normal(jax.random.PRNGKey(1), (2, 4, 20, 20), dtype=jnp.float32)
    y3 = l2_pooling(x3, _force_tiles=(8, 128))  # L=400 -> 4 blocks, 400 % 128 != 0
    jax.block_until_ready(y3)
    assert jnp.allclose(y3, _ref(x3), atol=1e-5, rtol=1e-5)

    print("KERNEL_OK")
</pallas_src>

<mosaic_0001>
module attributes {stable_mosaic.version = 11 : i64} {
  func.func @kernel(%arg0: i32, %arg1: memref<8x256xf32, #tpu.memory_space<vmem>>, %arg2: memref<8x1xf32, #tpu.memory_space<vmem>>) attributes {dimension_semantics = [#tpu.dimension_semantics<parallel>], iteration_bounds = array<i64: 1>, scalar_prefetch = 0 : i64, scratch_operands = 0 : i64, tpu.core_type = #tpu.core_type<tc>, window_params = [{transform_indices = @transform_0, window_bounds = array<i64: 8, 256>}, {transform_indices = @transform_1, window_bounds = array<i64: 8, 1>}]} {
    %c0 = arith.constant 0 : index
    %c0_0 = arith.constant 0 : index
    %0 = vector.load %arg1[%c0, %c0_0] : memref<8x256xf32, #tpu.memory_space<vmem>>, vector<8x256xf32>
    %1 = arith.mulf %0, %0 : vector<8x256xf32>
    %cst = arith.constant dense<0.000000e+00> : vector<8xf32>
    %2 = vector.multi_reduction <add>, %1, %cst [1] : vector<8x256xf32> to vector<8xf32>
    %3 = vector.shape_cast %2 : vector<8xf32> to vector<8x1xf32>
    %cst_1 = arith.constant 9.99999993E-9 : f32
    %4 = vector.broadcast %cst_1 : f32 to vector<8x1xf32>
    %5 = arith.addf %3, %4 : vector<8x1xf32>
    %6 = math.sqrt %5 : vector<8x1xf32>
    %c0_2 = arith.constant 0 : index
    %c0_3 = arith.constant 0 : index
    %7 = vector.load %arg2[%c0_2, %c0_3] : memref<8x1xf32, #tpu.memory_space<vmem>>, vector<8x1xf32>
    tpu.vector_store %arg2[%c0_2, %c0_3], %6 {strides = array<i32>} : memref<8x1xf32, #tpu.memory_space<vmem>>, vector<8x1xf32>,
    return
  }
  func.func @transform_0(%arg0: i32) -> (i32, i32) {
    %c0_i32 = arith.constant 0 : i32
    %c0_i32_0 = arith.constant 0 : i32
    return %arg0, %c0_i32 : i32, i32
  }
  func.func @transform_1(%arg0: i32) -> (i32, i32) {
    %c0_i32 = arith.constant 0 : i32
    %c0_i32_0 = arith.constant 0 : i32
    return %arg0, %c0_i32 : i32, i32
  }
}

</mosaic_0001>

<llo_original>
// kernel: tpu_custom_call.1
$region0: #{tpu_custom_call.1}
  #allocation0 [shape = 'u32[]', space=smem, size = 0x4, offset = 0x4, fixed_abs, tag = 'smem constant byte address 0x4 - core index']
  #allocation1 [shape = 'u32[144,128]{1,0:T(1,128)}', space=vmem, size = 0x12000, scoped, tag = 'internal scratch']
  %s0 = inlined_call_operand.hbm [shape: f32[8,256], index: 0, kind: input, shape index: {}]
  %s1 = inlined_call_operand.vmem [shape: f32[8,1], index: 1, kind: output, shape index: {}]
  %s2 = sld [smem:[#allocation0]]
  $region18: #{tpu_custom_call.1} parent=0
    _
  %s4 = ssub.s32 1, %s2
  %s5 = scalar_select 0, %s4, %s2
  $region1: #{tpu_custom_call.1} parent=0
    #allocation2 [shape = 'u8[8192]{0}', space=vmem, size = 0x2000, scoped, tag = 'input window, operand 0, single buffered']
    #allocation3 [shape = 's32[1]{0}', space=sflag, size = 0x4, scoped, tag = 'scoped memory for tpu_custom_call.1']
    %6 = vsyncpa [#allocation3], 0
    // Predicated region
    $region2: #{tpu_custom_call.1} parent=1 // pred_check
      _
    $region3: #{tpu_custom_call.1} parent=1 // pred_check_branch
      %8 = sbr.rel (0) target = $region5
    $region4: #{tpu_custom_call.1} parent=1 // pred_region
      %s10 = ssub.s32 256, 256
      %11 = vsyncadd [#allocation3], %s10
      %s13 = sshll.u32 [#allocation2], 4
      %s14 = int_to_ptr.vmem [resolvable:$true] %s13
      %16 = dma.hbm_to_vmem [thread:$0]  %s0, 256, %s14, [#allocation3]
    $region5: #{tpu_custom_call.1} parent=1 // pred_fallthru
      _
    // Predicated region
    $region6: #{tpu_custom_call.1} parent=1 // pred_check
      _
    $region7: #{tpu_custom_call.1} parent=1 // pred_check_branch
      %18 = sbr.rel (0) target = $region9
    $region8: #{tpu_custom_call.1} parent=1 // pred_region
      %19 = dma.done [#allocation3], 256
    $region9: #{tpu_custom_call.1} parent=1 // pred_fallthru
      _
    %v20 = vld [vmem:[#allocation2] sm:$0xff]
    %v21 = vld [vmem:[#allocation2 + $0x8] sm:$0xff]
    %v22 = vmul.f32 %v20, %v20
    %v23 = vmul.f32 %v21, %v21
    %v24 = vadd.f32 %v22, %v23
    %25 = vadd.xlane.f32.xlu0 %v24
    %v26 = vpop.xlane.xlu0 %25
    %v27 = vadd.f32 %v26, 1e-08
    %v28 = vrsqrt.pop %v27
    %v29 = vmul.f32 %v27, %v28
    %vm30 = vcmp.eq.f32.partialorder %v27, inf
    %v31 = vsel %vm30, %v27, %v29
    %vm32 = vcmp.eq.f32.partialorder %v27, 0.0
    %v33 = vand.u32 %v27, 2147483648
    %v34 = vsel %vm32, %v33, %v31
    %vm35 = vcmask 7168
    %36 = vst.msk [vmem:[%s1] sm:$0xff] %vm35, %v34
    // Predicated region
    $region10: #{tpu_custom_call.1} parent=1 // pred_check
      _
    $region11: #{tpu_custom_call.1} parent=1 // pred_check_branch
      %38 = sbr.rel (0) target = $region13
    $region12: #{tpu_custom_call.1} parent=1 // pred_region
      _
    $region13: #{tpu_custom_call.1} parent=1 // pred_fallthru
      _
    // Predicated region
    $region14: #{tpu_custom_call.1} parent=1 // pred_check
      _
    $region15: #{tpu_custom_call.1} parent=1 // pred_check_branch
      %40 = sbr.rel (0) target = $region17
    $region16: #{tpu_custom_call.1} parent=1 // pred_region
      _
    $region17: #{tpu_custom_call.1} parent=1 // pred_fallthru
      _
    %41 = vsyncpa [#allocation3], 1

</llo_original>
